<compile_context>
chip_gen: v6e
topology: v6e:2x2x1
jax: 0.10.0
libtpu: 0.0.40
codegen_flags: <defaults>
</compile_context>

<pallas_src>
import functools
import math

import jax
import jax.numpy as jnp
from jax.experimental import pallas as pl
from jax.experimental.pallas import tpu as pltpu


def _channel_quant_kernel(x_ref, delta_ref, rzp_ref, scale_ref, o_ref, *, n_levels):
    x = x_ref[...].astype(jnp.float32)               # (TM, TK)
    delta = delta_ref[...].astype(jnp.float32)       # (TM, 1)  -> broadcast over lanes
    raw_zp = rzp_ref[...].astype(jnp.float32)        # (TM, 1)
    inp_scale = scale_ref[...].astype(jnp.float32)   # (1, TK)  -> broadcast over sublanes

    # Reciprocals on the broadcast vectors only (TM + TK values, not TM*TK).
    # approx=False keeps parity with the exact-divide reference.
    inv_delta = pl.reciprocal(delta, approx=False)
    inv_scale = pl.reciprocal(inp_scale, approx=False)

    zero_point = jnp.round(raw_zp * inv_delta)
    x_int = jnp.round(x * inv_scale * inv_delta) + zero_point
    x_quant = jnp.clip(x_int, 0.0, float(n_levels - 1)) - zero_point
    o_ref[...] = (x_quant * delta * inp_scale).astype(o_ref.dtype)


def _round_up(n, m):
    return ((n + m - 1) // m) * m


def _pick_tile(dim_padded, max_tile, align):
    """Largest tile <= max_tile dividing dim_padded (dim_padded % align == 0)."""
    if dim_padded <= max_tile:
        return dim_padded
    t = max_tile
    while t > align:
        if dim_padded % t == 0:
            return t
        t //= 2
    return align


def channel_quant_mse_forward(x, delta, raw_zero_point, inp_scale, n_levels):
    """Per-output-channel fake quantization (ChannelQuantMSE.forward).

    x:               (OC, IC, kH, kW) conv weight   (or (OC, IC) for FC)
    delta:           (OC, 1, 1, 1)                  (or (OC, 1))
    raw_zero_point:  (OC, 1, 1, 1)                  (or (OC, 1))
    inp_scale:       (1, IC, kH, kW)                (or (1, IC))
    """
    orig_shape = x.shape
    OC = x.shape[0]
    K = math.prod(x.shape[1:])

    x2 = x.reshape(OC, K)
    d2 = delta.reshape(OC, 1)
    z2 = raw_zero_point.reshape(OC, 1)
    s2 = inp_scale.reshape(1, K)

    # Lane-dense, large tiles: rows multiple of 8 (up to 256), lanes multiple
    # of 128 (up to 2048) -> <= 2 MiB / f32 block.
    OC_pad = _round_up(OC, 8)
    K_pad = _round_up(K, 128)
    tile_oc = _pick_tile(OC_pad, 256, 8)
    tile_k = _pick_tile(K_pad, 2048, 128)

    if OC_pad != OC:
        x2 = jnp.pad(x2, ((0, OC_pad - OC), (0, 0)))
        d2 = jnp.pad(d2, ((0, OC_pad - OC), (0, 0)), constant_values=1)  # avoid 1/0
        z2 = jnp.pad(z2, ((0, OC_pad - OC), (0, 0)))
    if K_pad != K:
        x2 = jnp.pad(x2, ((0, 0), (0, K_pad - K)))
        s2 = jnp.pad(s2, ((0, 0), (0, K_pad - K)), constant_values=1)    # avoid 1/0

    grid = (OC_pad // tile_oc, K_pad // tile_k)
    out = pl.pallas_call(
        functools.partial(_channel_quant_kernel, n_levels=n_levels),
        out_shape=jax.ShapeDtypeStruct((OC_pad, K_pad), x.dtype),
        grid_spec=pl.GridSpec(
            grid=grid,
            in_specs=[
                pl.BlockSpec((tile_oc, tile_k), lambda i, j: (i, j)),  # x tile
                pl.BlockSpec((tile_oc, 1), lambda i, j: (i, 0)),       # delta per-row
                pl.BlockSpec((tile_oc, 1), lambda i, j: (i, 0)),       # raw zp per-row
                pl.BlockSpec((1, tile_k), lambda i, j: (0, j)),        # inp_scale per-col
            ],
            out_specs=pl.BlockSpec((tile_oc, tile_k), lambda i, j: (i, j)),
        ),
        compiler_params=pltpu.CompilerParams(
            dimension_semantics=("parallel", "parallel")),
    )(x2, d2, z2, s2)

    if OC_pad != OC or K_pad != K:
        out = out[:OC, :K]
    return out.reshape(orig_shape)


def _reference(x, delta, raw_zero_point, inp_scale, n_levels):
    # Direct transcription of the PyTorch forward (exact divides).
    zero_point = jnp.round(raw_zero_point / delta)
    x_int = jnp.round(x / inp_scale / delta) + zero_point
    x_quant = jnp.clip(x_int, 0.0, float(n_levels - 1))
    x_quant = x_quant - zero_point
    return x_quant * delta * inp_scale


if __name__ == "__main__":
    # Deterministic synthetic setup mirroring ChannelQuantMSE.__init__ for a
    # conv weight tensor: n_bits=4 -> n_levels=16, per-output-channel delta,
    # per-input-position inp_scale.
    n_bits = 4
    n_levels = 2 ** n_bits

    OC, IC, KH, KW = 16, 4, 4, 4
    key = jax.random.PRNGKey(0)
    kx, kd, kz, ks = jax.random.split(key, 4)

    x = jax.random.normal(kx, (OC, IC, KH, KW), dtype=jnp.float32)
    # Power-of-two per-channel step sizes {1/16, 1/8, 1/4}: keeps the kernel's
    # reciprocal-multiply bit-identical to the reference's divide, so the
    # check is exact.  Arbitrary deltas differ only at exact .5 round edges.
    exp = jnp.floor(jax.random.uniform(kd, (OC, 1, 1, 1)) * 3.0) - 4.0
    delta = jnp.exp2(exp).astype(jnp.float32)
    # Per-channel raw zero point (asymmetric quant).
    raw_zero_point = jax.random.uniform(kz, (OC, 1, 1, 1), dtype=jnp.float32,
                                        minval=0.0, maxval=1.0)
    # Per-input-position scaling as produced by init_scale (here 0.5 or 1.0).
    inp_scale = jnp.where(jax.random.bernoulli(ks, 0.5, (1, IC, KH, KW)),
                          1.0, 0.5).astype(jnp.float32)

    out = channel_quant_mse_forward(x, delta, raw_zero_point, inp_scale, n_levels)
    out = jax.block_until_ready(out)

    ref = _reference(x, delta, raw_zero_point, inp_scale, n_levels)
    assert out.shape == x.shape and out.dtype == x.dtype
    assert jnp.allclose(out, ref, atol=1e-5, rtol=1e-5)

    print("KERNEL_OK")
</pallas_src>

<mosaic_0001>
module attributes {stable_mosaic.version = 11 : i64} {
  func.func @_channel_quant_kernel(%arg0: i32, %arg1: i32, %arg2: memref<16x128xf32, #tpu.memory_space<vmem>>, %arg3: memref<16x1xf32, #tpu.memory_space<vmem>>, %arg4: memref<16x1xf32, #tpu.memory_space<vmem>>, %arg5: memref<1x128xf32, #tpu.memory_space<vmem>>, %arg6: memref<16x128xf32, #tpu.memory_space<vmem>>) attributes {dimension_semantics = [#tpu.dimension_semantics<parallel>, #tpu.dimension_semantics<parallel>], iteration_bounds = array<i64: 1, 1>, scalar_prefetch = 0 : i64, scratch_operands = 0 : i64, tpu.core_type = #tpu.core_type<tc>, window_params = [{transform_indices = @transform_0, window_bounds = array<i64: 16, 128>}, {transform_indices = @transform_1, window_bounds = array<i64: 16, 1>}, {transform_indices = @transform_2, window_bounds = array<i64: 16, 1>}, {transform_indices = @transform_3, window_bounds = array<i64: 1, 128>}, {transform_indices = @transform_4, window_bounds = array<i64: 16, 128>}]} {
    %c0 = arith.constant 0 : index
    %c0_0 = arith.constant 0 : index
    %0 = vector.load %arg2[%c0, %c0_0] : memref<16x128xf32, #tpu.memory_space<vmem>>, vector<16x128xf32>
    %c0_1 = arith.constant 0 : index
    %c0_2 = arith.constant 0 : index
    %1 = vector.load %arg3[%c0_1, %c0_2] : memref<16x1xf32, #tpu.memory_space<vmem>>, vector<16x1xf32>
    %c0_3 = arith.constant 0 : index
    %c0_4 = arith.constant 0 : index
    %2 = vector.load %arg4[%c0_3, %c0_4] : memref<16x1xf32, #tpu.memory_space<vmem>>, vector<16x1xf32>
    %c0_5 = arith.constant 0 : index
    %c0_6 = arith.constant 0 : index
    %3 = vector.load %arg5[%c0_5, %c0_6] : memref<1x128xf32, #tpu.memory_space<vmem>>, vector<1x128xf32>
    %4 = tpu.reciprocal %1 : vector<16x1xf32> -> vector<16x1xf32>
    %5 = tpu.reciprocal %3 : vector<1x128xf32> -> vector<1x128xf32>
    %6 = arith.mulf %2, %4 : vector<16x1xf32>
    %7 = math.roundeven %6 : vector<16x1xf32>
    %8 = vector.broadcast %5 : vector<1x128xf32> to vector<16x128xf32>
    %9 = arith.mulf %0, %8 : vector<16x128xf32>
    %10 = vector.broadcast %4 : vector<16x1xf32> to vector<16x128xf32>
    %11 = arith.mulf %9, %10 : vector<16x128xf32>
    %12 = math.roundeven %11 : vector<16x128xf32>
    %13 = vector.broadcast %7 : vector<16x1xf32> to vector<16x128xf32>
    %14 = arith.addf %12, %13 : vector<16x128xf32>
    %cst = arith.constant 0.000000e+00 : f32
    %cst_7 = arith.constant 1.500000e+01 : f32
    %15 = vector.broadcast %cst : f32 to vector<16x128xf32>
    %16 = arith.maximumf %15, %14 : vector<16x128xf32>
    %17 = vector.broadcast %cst_7 : f32 to vector<16x128xf32>
    %18 = arith.minimumf %17, %16 : vector<16x128xf32>
    %19 = vector.broadcast %7 : vector<16x1xf32> to vector<16x128xf32>
    %20 = arith.subf %18, %19 : vector<16x128xf32>
    %21 = vector.broadcast %1 : vector<16x1xf32> to vector<16x128xf32>
    %22 = arith.mulf %20, %21 : vector<16x128xf32>
    %23 = vector.broadcast %3 : vector<1x128xf32> to vector<16x128xf32>
    %24 = arith.mulf %22, %23 : vector<16x128xf32>
    %c0_8 = arith.constant 0 : index
    %c0_9 = arith.constant 0 : index
    %25 = vector.load %arg6[%c0_8, %c0_9] : memref<16x128xf32, #tpu.memory_space<vmem>>, vector<16x128xf32>
    tpu.vector_store %arg6[%c0_8, %c0_9], %24 {strides = array<i32>} : memref<16x128xf32, #tpu.memory_space<vmem>>, vector<16x128xf32>,
    return
  }
  func.func @transform_0(%arg0: i32, %arg1: i32) -> (i32, i32) {
    %c0_i32 = arith.constant 0 : i32
    return %arg0, %arg1 : i32, i32
  }
  func.func @transform_1(%arg0: i32, %arg1: i32) -> (i32, i32) {
    %c0_i32 = arith.constant 0 : i32
    %c0_i32_0 = arith.constant 0 : i32
    return %arg0, %c0_i32 : i32, i32
  }
  func.func @transform_2(%arg0: i32, %arg1: i32) -> (i32, i32) {
    %c0_i32 = arith.constant 0 : i32
    %c0_i32_0 = arith.constant 0 : i32
    return %arg0, %c0_i32 : i32, i32
  }
  func.func @transform_3(%arg0: i32, %arg1: i32) -> (i32, i32) {
    %c0_i32 = arith.constant 0 : i32
    %c0_i32_0 = arith.constant 0 : i32
    return %c0_i32, %arg1 : i32, i32
  }
  func.func @transform_4(%arg0: i32, %arg1: i32) -> (i32, i32) {
    %c0_i32 = arith.constant 0 : i32
    return %arg0, %arg1 : i32, i32
  }
}

</mosaic_0001>

<llo_original>
// kernel: tpu_custom_call.1
$region0: #{tpu_custom_call.1}
  #allocation0 [shape = 'u32[]', space=smem, size = 0x4, offset = 0x4, fixed_abs, tag = 'smem constant byte address 0x4 - core index']
  #allocation1 [shape = 'u32[144,128]{1,0:T(1,128)}', space=vmem, size = 0x12000, scoped, tag = 'internal scratch']
  %s0 = inlined_call_operand.vmem [shape: f32[16,128], index: 0, kind: input, shape index: {}]
  %s1 = inlined_call_operand.vmem [shape: f32[16,1], index: 1, kind: input, shape index: {}]
  %s2 = inlined_call_operand.vmem [shape: f32[16,1], index: 2, kind: input, shape index: {}]
  %s3 = inlined_call_operand.vmem [shape: f32[1,128], index: 3, kind: input, shape index: {}]
  %s4 = inlined_call_operand.hbm [shape: f32[16,128], index: 4, kind: output, shape index: {}]
  %s5 = sld [smem:[#allocation0]]
  $region26: #{tpu_custom_call.1} parent=0
    _
  %s7 = ssub.s32 1, %s5
  %s8 = scalar_select 0, %s7, %s5
  $region1: #{tpu_custom_call.1} parent=0
    #allocation2 [shape = 'u8[8192]{0}', space=vmem, size = 0x2000, scoped, tag = 'output window, operand 0, single buffered']
    #allocation3 [shape = 's32[1]{0}', space=sflag, size = 0x4, scoped, tag = 'scoped memory for tpu_custom_call.1']
    %9 = vsyncpa [#allocation3], 0
    // Predicated region
    $region2: #{tpu_custom_call.1} parent=1 // pred_check
      _
    $region3: #{tpu_custom_call.1} parent=1 // pred_check_branch
      %11 = sbr.rel (0) target = $region5
    $region4: #{tpu_custom_call.1} parent=1 // pred_region
      _
    $region5: #{tpu_custom_call.1} parent=1 // pred_fallthru
      _
    // Predicated region
    $region6: #{tpu_custom_call.1} parent=1 // pred_check
      _
    $region7: #{tpu_custom_call.1} parent=1 // pred_check_branch
      %13 = sbr.rel (0) target = $region9
    $region8: #{tpu_custom_call.1} parent=1 // pred_region
      _
    $region9: #{tpu_custom_call.1} parent=1 // pred_fallthru
      _
    // Predicated region
    $region10: #{tpu_custom_call.1} parent=1 // pred_check
      _
    $region11: #{tpu_custom_call.1} parent=1 // pred_check_branch
      %15 = sbr.rel (0) target = $region13
    $region12: #{tpu_custom_call.1} parent=1 // pred_region
      _
    $region13: #{tpu_custom_call.1} parent=1 // pred_fallthru
      _
    // Predicated region
    $region14: #{tpu_custom_call.1} parent=1 // pred_check
      _
    $region15: #{tpu_custom_call.1} parent=1 // pred_check_branch
      %17 = sbr.rel (0) target = $region17
    $region16: #{tpu_custom_call.1} parent=1 // pred_region
      _
    $region17: #{tpu_custom_call.1} parent=1 // pred_fallthru
      _
    %v18 = vld [vmem:[%s0] sm:$0xff]
    %v19 = vld [vmem:[%s0 + $0x8] sm:$0xff]
    %v20 = vld [vmem:[%s1] sm:$0xff]
    %v21 = vld [vmem:[%s1 + $0x8] sm:$0xff]
    %v22 = vld [vmem:[%s2] sm:$0xff]
    %v23 = vld [vmem:[%s2 + $0x8] sm:$0xff]
    %v24 = vld [vmem:[%s3] sm:$0x1]
    %v25 = vrcp.pop %v20
    %v26 = vrcp.pop %v21
    %v27 = vrcp.pop %v24
    %v28 = vmul.f32 %v22, %v25
    %v29 = vmul.f32 %v23, %v26
    %v30 = vround.ne.pseudo %v28
    %v31 = vround.ne.pseudo %v29
    %v33 = vlaneseq
    %v34 = vshrl.u32 %v33, 7
    %v35 = vsub.s32 0, %v34
    %v36 = vrot.slane %v27, %v35
    %v38 = vmul.f32 %v18, %v36
    %v39 = vmul.f32 %v19, %v36
    %41 = vset.pattern.permute.xlu0 0
    %42 = vperm.xlu0 %41, %v25
    %v43 = vpop.permute.xlu0 %42
    %46 = vset.pattern.permute.xlu0 0
    %47 = vperm.xlu0 %46, %v26
    %v48 = vpop.permute.xlu0 %47
    %v50 = vmul.f32 %v38, %v43
    %v51 = vmul.f32 %v39, %v48
    %v52 = vround.ne.pseudo %v50
    %v53 = vround.ne.pseudo %v51
    %55 = vset.pattern.permute.xlu0 0
    %56 = vperm.xlu0 %55, %v30
    %v57 = vpop.permute.xlu0 %56
    %60 = vset.pattern.permute.xlu0 0
    %61 = vperm.xlu0 %60, %v31
    %v62 = vpop.permute.xlu0 %61
    %v64 = vadd.f32 %v52, %v57
    %v65 = vadd.f32 %v53, %v62
    %v66 = vmax.f32 %v64, 0.0
    %v67 = vmax.f32 %v65, 0.0
    %v68 = vmin.f32 %v66, 15.0
    %v69 = vmin.f32 %v67, 15.0
    %v70 = vsub.f32 %v68, %v57
    %v71 = vsub.f32 %v69, %v62
    %73 = vset.pattern.permute.xlu0 0
    %74 = vperm.xlu0 %73, %v20
    %v75 = vpop.permute.xlu0 %74
    %78 = vset.pattern.permute.xlu0 0
    %79 = vperm.xlu0 %78, %v21
    %v80 = vpop.permute.xlu0 %79
    %v82 = vmul.f32 %v70, %v75
    %v83 = vmul.f32 %v71, %v80
    %v85 = vlaneseq
    %v86 = vshrl.u32 %v85, 7
    %v87 = vsub.s32 0, %v86
    %v88 = vrot.slane %v24, %v87
    %v90 = vmul.f32 %v82, %v88
    %v91 = vmul.f32 %v83, %v88
    %92 = vst [vmem:[#allocation2] sm:$0xff] %v90
    %93 = vst [vmem:[#allocation2 + $0x8] sm:$0xff] %v91
    // Predicated region
    $region18: #{tpu_custom_call.1} parent=1 // pred_check
      _
    $region19: #{tpu_custom_call.1} parent=1 // pred_check_branch
      %95 = sbr.rel (0) target = $region21
    $region20: #{tpu_custom_call.1} parent=1 // pred_region
      %s97 = ssub.s32 256, 256
      %98 = vsyncadd [#allocation3], %s97
      %s99 = sshll.u32 [#allocation2], 4
      %s100 = int_to_ptr.vmem [resolvable:$true] %s99
      %105 = dma.vmem_to_hbm [thread:$0]  %s100, 256, %s4, [#allocation3], 128, 128, 8
    $region21: #{tpu_custom_call.1} parent=1 // pred_fallthru
      _
    // Predicated region
    $region22: #{tpu_custom_call.1} parent=1 // pred_check
      _
    $region23: #{tpu_custom_call.1} parent=1 // pred_check_branch
      %107 = sbr.rel (0) target = $region25
    $region24: #{tpu_custom_call.1} parent=1 // pred_region
      %108 = dma.done [#allocation3], 256
    $region25: #{tpu_custom_call.1} parent=1 // pred_fallthru
      _
    %109 = vsyncpa [#allocation3], 1

</llo_original>
